<compile_context>
chip_gen: v7x
topology: tpu7x:2x2x1
jax: 0.10.0
libtpu: 0.0.40
codegen_flags: <defaults>
</compile_context>

<pallas_src>
import functools

import jax
import jax.numpy as jnp
from jax import lax
from jax.experimental import pallas as pl
from jax.experimental.pallas import tpu as pltpu

_COMPUTE_DTYPE = jnp.bfloat16      # MXU operand dtype (accumulation stays f32)


def _round_up(x, m):
    return (x + m - 1) // m * m


def _gelu(x):
    # tanh-approximate GELU (EUP-friendly).  PyTorch nn.GELU() is erf-exact;
    # max abs deviation ~3e-3.  TODO(synk): switch to erf-exact if bit-parity
    # with the Torch checkpoint is required.
    c = 0.7978845608028654  # sqrt(2/pi)
    return 0.5 * x * (1.0 + jnp.tanh(c * (x + 0.044715 * x * x * x)))


# ----------------------------- fused stem kernel -----------------------------

def _stem_kernel(xa_ref, xb_ref, xc_ref, w1_ref, b1_ref, w2_ref, b2_ref,
                 pos_ref, o_ref, *, tl2, l1):
    """One (batch, time-tile) step of the fused conv1+GELU+conv2+GELU+pos stem.

    xa/xb/xc : (1, TL2, CKp) bf16 — conv1 im2col rows for conv2 taps k=0,1,2.
               Row j of tap k is the conv1 input window at h1 position
               2*t2 - 1 + k, with t2 = global output time = l2*TL2 + j.
    w1       : (CKp, D) bf16        b1, b2 : (1, D) f32
    w2       : (3, D, D) bf16       pos    : (TL2, D) f32
    o        : (1, TL2, D) f32
    """
    w1 = w1_ref[...]
    b1 = b1_ref[...]

    def conv1(tap_ref):
        h = jnp.dot(tap_ref[0], w1, preferred_element_type=jnp.float32) + b1
        return _gelu(h)                                   # f32 (TL2, D)

    ha = conv1(xa_ref)          # h1[2*t2 - 1]
    hb = conv1(xb_ref)          # h1[2*t2]
    hc = conv1(xc_ref)          # h1[2*t2 + 1]

    # conv2 zero-padding: h1 rows outside [0, L1) must be ZERO (not conv1 of a
    # zero-extended input).  Only the k=0 / k=2 taps can fall outside.
    t2 = (lax.broadcasted_iota(jnp.int32, (tl2, 1), 0)
          + pl.program_id(1) * tl2)                       # global output time
    ha = jnp.where(2 * t2 - 1 >= 0, ha, 0.0)
    hc = jnp.where(2 * t2 + 1 < l1, hc, 0.0)
    # (hb rows with 2*t2 >= L1 only feed padded output rows sliced off outside.)

    cdt = _COMPUTE_DTYPE
    y = (jnp.dot(ha.astype(cdt), w2_ref[0], preferred_element_type=jnp.float32)
         + jnp.dot(hb.astype(cdt), w2_ref[1], preferred_element_type=jnp.float32)
         + jnp.dot(hc.astype(cdt), w2_ref[2], preferred_element_type=jnp.float32)
         + b2_ref[...])
    o_ref[0] = (_gelu(y) + pos_ref[...]).astype(o_ref.dtype)


# ------------------------------- JAX glue ------------------------------------

def sinusoids(length, channels, max_timescale=10000.0):
    """Whisper-style sinusoidal positional embedding, shape (length, channels)."""
    assert channels % 2 == 0
    log_inc = jnp.log(jnp.float32(max_timescale)) / (channels // 2 - 1)
    inv = jnp.exp(-log_inc * jnp.arange(channels // 2, dtype=jnp.float32))
    scaled = jnp.arange(length, dtype=jnp.float32)[:, None] * inv[None, :]
    return jnp.concatenate([jnp.sin(scaled), jnp.cos(scaled)], axis=1)


def _conv2_tap_inputs(x_nlc, l2p, ckp):
    """Build the three stride-2 conv1-input row sets that conv2 needs.

    tap k, row j  ==  conv1 im2col row at h1 position (2*j - 1 + k):
        concat_{kk=0..2} x[2*j - 2 + k + kk, :]    (zeros outside [0, L))
    Returns three arrays of shape (B, l2p, ckp) in _COMPUTE_DTYPE.
    """
    B, L, Cin = x_nlc.shape
    pad_r = 2 * l2p + 1 - L                    # >= 1 by construction of l2p
    xp = jnp.pad(x_nlc, ((0, 0), (2, pad_r), (0, 0)))

    def tap(base):
        cols = [xp[:, base + kk: base + kk + 2 * l2p: 2, :] for kk in range(3)]
        t = jnp.concatenate(cols, axis=-1)                 # (B, l2p, 3*Cin)
        t = jnp.pad(t, ((0, 0), (0, 0), (0, ckp - 3 * Cin)))
        return t.astype(_COMPUTE_DTYPE)

    return tap(0), tap(1), tap(2)


def qwen_audio_stem(x_mel_ncw, params, *, tl2=256):
    """x_mel_ncw: (B, n_mels, T) PyTorch NCW layout -> (B, T_out, d_model)."""
    w1, b1, w2, b2 = params["w1"], params["b1"], params["w2"], params["b2"]
    D, Cin, K = w1.shape
    assert K == 3 and w2.shape == (D, D, 3)

    x_nlc = jnp.transpose(x_mel_ncw, (0, 2, 1)).astype(jnp.float32)
    B, L, _ = x_nlc.shape
    l1 = L                                     # conv1: k=3, s=1, p=1
    l2 = (l1 - 1) // 2 + 1                     # conv2: k=3, s=2, p=1

    # Time tile along conv2 output; multiple of 8 sublanes.
    tl2 = max(8, min(tl2, _round_up(l2, 8)))
    assert tl2 % 8 == 0
    n_t2 = pl.cdiv(l2, tl2)
    l2p = n_t2 * tl2

    ck = 3 * Cin
    ckp = _round_up(ck, 128)                   # lane-pad contraction dim

    xa, xb, xc = _conv2_tap_inputs(x_nlc, l2p, ckp)

    # Weight layouts: conv1 as a single (CKp, D) matrix (row = k*Cin + ci);
    # conv2 as a stacked (3, D, D) set of tap matrices (din, dout).
    w1m = jnp.transpose(w1, (2, 1, 0)).reshape(ck, D)
    w1m = jnp.pad(w1m, ((0, ckp - ck), (0, 0))).astype(_COMPUTE_DTYPE)
    w2s = jnp.transpose(w2, (2, 1, 0)).astype(_COMPUTE_DTYPE)
    b1m = b1.reshape(1, D).astype(jnp.float32)
    b2m = b2.reshape(1, D).astype(jnp.float32)
    pos = sinusoids(l2p, D)                                  # (l2p, D) f32

    kernel = functools.partial(_stem_kernel, tl2=tl2, l1=l1)

    # Advisory cost hint: conv1 (3 taps) + conv2 (3 taps) MXU flops, one tanh
    # per GELU output, tap / weight / pos reads + output writes.
    flops = 2 * B * l2p * (3 * ckp * D + 3 * D * D)
    transcendentals = 4 * B * l2p * D
    bytes_accessed = (3 * B * l2p * ckp * 2            # taps (bf16)
                      + (ckp * D + 3 * D * D) * 2      # weights (bf16)
                      + l2p * D * 4                    # pos (f32)
                      + B * l2p * D * 4)               # output (f32)

    out = pl.pallas_call(
        kernel,
        out_shape=jax.ShapeDtypeStruct((B, l2p, D), jnp.float32),
        grid=(B, n_t2),
        in_specs=[
            pl.BlockSpec((1, tl2, ckp), lambda b, t: (b, t, 0)),   # xa
            pl.BlockSpec((1, tl2, ckp), lambda b, t: (b, t, 0)),   # xb
            pl.BlockSpec((1, tl2, ckp), lambda b, t: (b, t, 0)),   # xc
            pl.BlockSpec((ckp, D), lambda b, t: (0, 0)),           # w1
            pl.BlockSpec((1, D), lambda b, t: (0, 0)),             # b1
            pl.BlockSpec((3, D, D), lambda b, t: (0, 0, 0)),       # w2
            pl.BlockSpec((1, D), lambda b, t: (0, 0)),             # b2
            pl.BlockSpec((tl2, D), lambda b, t: (t, 0)),           # pos
        ],
        out_specs=pl.BlockSpec((1, tl2, D), lambda b, t: (b, t, 0)),
        compiler_params=pltpu.CompilerParams(
            dimension_semantics=("parallel", "parallel"),
            vmem_limit_bytes=48 * 1024 * 1024),
        cost_estimate=pl.CostEstimate(
            flops=int(flops),
            transcendentals=int(transcendentals),
            bytes_accessed=int(bytes_accessed)),
    )(xa, xb, xc, w1m, b1m, w2s, b2m, pos)

    return out[:, :l2, :]                                    # drop time padding


# --------------------------- pure-JAX reference -------------------------------

def _conv1d_ref(x_ncw, w, b, stride, pad):
    y = lax.conv_general_dilated(
        x_ncw, w, window_strides=(stride,), padding=[(pad, pad)],
        dimension_numbers=("NCH", "OIH", "NCH"))
    return y + b[None, :, None]


def qwen_audio_stem_ref(x_mel_ncw, params):
    h = _gelu(_conv1d_ref(x_mel_ncw, params["w1"], params["b1"], 1, 1))
    h = _gelu(_conv1d_ref(h, params["w2"], params["b2"], 2, 1))
    h = jnp.transpose(h, (0, 2, 1))                      # -> (B, T_out, d_model)
    return h + sinusoids(h.shape[1], h.shape[2])[None]


# ----------------------------------- main -------------------------------------

if __name__ == "__main__":
    B, n_mels, T, d_model = 2, 16, 64, 32

    key = jax.random.PRNGKey(0)
    k1, k2, k3, k4, kx = jax.random.split(key, 5)
    params = {
        "w1": jax.random.normal(k1, (d_model, n_mels, 3), jnp.float32) * 0.02,
        "b1": jax.random.normal(k2, (d_model,), jnp.float32) * 0.02,
        "w2": jax.random.normal(k3, (d_model, d_model, 3), jnp.float32) * 0.02,
        "b2": jax.random.normal(k4, (d_model,), jnp.float32) * 0.02,
    }
    x_mel = jax.random.normal(kx, (B, n_mels, T), jnp.float32)

    # tl2=16 -> two time tiles, exercising the left/right boundary masking.
    out = jax.block_until_ready(qwen_audio_stem(x_mel, params, tl2=16))
    ref = jax.block_until_ready(qwen_audio_stem_ref(x_mel, params))

    assert out.shape == (B, T // 2, d_model), out.shape
    err = float(jnp.max(jnp.abs(out - ref)))
    # bf16 MXU operands vs f32 reference -> loosened tolerance.
    assert err < 1e-2, err

    print("KERNEL_OK")
</pallas_src>

<mosaic_0001>
module attributes {stable_mosaic.version = 11 : i64} {
  func.func @_stem_kernel(%arg0: i32, %arg1: i32, %arg2: memref<1x16x128xbf16, #tpu.memory_space<vmem>>, %arg3: memref<1x16x128xbf16, #tpu.memory_space<vmem>>, %arg4: memref<1x16x128xbf16, #tpu.memory_space<vmem>>, %arg5: memref<128x32xbf16, #tpu.memory_space<vmem>>, %arg6: memref<1x32xf32, #tpu.memory_space<vmem>>, %arg7: memref<3x32x32xbf16, #tpu.memory_space<vmem>>, %arg8: memref<1x32xf32, #tpu.memory_space<vmem>>, %arg9: memref<16x32xf32, #tpu.memory_space<vmem>>, %arg10: memref<1x16x32xf32, #tpu.memory_space<vmem>>) attributes {dimension_semantics = [#tpu.dimension_semantics<parallel>, #tpu.dimension_semantics<parallel>], iteration_bounds = array<i64: 2, 2>, scalar_prefetch = 0 : i64, scratch_operands = 0 : i64, tpu.core_type = #tpu.core_type<tc>, window_params = [{transform_indices = @transform_0, window_bounds = array<i64: 1, 16, 128>}, {transform_indices = @transform_1, window_bounds = array<i64: 1, 16, 128>}, {transform_indices = @transform_2, window_bounds = array<i64: 1, 16, 128>}, {pipeline_mode = #tpu.pipeline_mode<synchronous>, transform_indices = @transform_3, window_bounds = array<i64: 128, 32>}, {pipeline_mode = #tpu.pipeline_mode<synchronous>, transform_indices = @transform_4, window_bounds = array<i64: 1, 32>}, {pipeline_mode = #tpu.pipeline_mode<synchronous>, transform_indices = @transform_5, window_bounds = array<i64: 3, 32, 32>}, {pipeline_mode = #tpu.pipeline_mode<synchronous>, transform_indices = @transform_6, window_bounds = array<i64: 1, 32>}, {transform_indices = @transform_7, window_bounds = array<i64: 16, 32>}, {transform_indices = @transform_8, window_bounds = array<i64: 1, 16, 32>}]} {
    %c0 = arith.constant 0 : index
    %c0_0 = arith.constant 0 : index
    %0 = vector.load %arg5[%c0, %c0_0] : memref<128x32xbf16, #tpu.memory_space<vmem>>, vector<128x32xbf16>
    %c0_1 = arith.constant 0 : index
    %c0_2 = arith.constant 0 : index
    %1 = vector.load %arg6[%c0_1, %c0_2] : memref<1x32xf32, #tpu.memory_space<vmem>>, vector<1x32xf32>
    %c0_3 = arith.constant 0 : index
    %c0_4 = arith.constant 0 : index
    %c0_5 = arith.constant 0 : index
    %2 = vector.load %arg2[%c0_3, %c0_4, %c0_5] : memref<1x16x128xbf16, #tpu.memory_space<vmem>>, vector<1x16x128xbf16>
    %3 = vector.shape_cast %2 : vector<1x16x128xbf16> to vector<16x128xbf16>
    %cst = arith.constant dense<0.000000e+00> : vector<16x32xf32>
    %4 = tpu.matmul %3, %0, %cst {dimension_numbers = #tpu.dot_dimension_numbers<[1], [0], [0], [1], [0, 0, 1, 1], [], []>} : vector<16x128xbf16>, vector<128x32xbf16>, vector<16x32xf32> -> vector<16x32xf32>
    %5 = vector.broadcast %1 : vector<1x32xf32> to vector<16x32xf32>
    %6 = arith.addf %4, %5 : vector<16x32xf32>
    %cst_6 = arith.constant 5.000000e-01 : f32
    %7 = vector.broadcast %cst_6 : f32 to vector<16x32xf32>
    %8 = arith.mulf %7, %6 : vector<16x32xf32>
    %cst_7 = arith.constant 4.471500e-02 : f32
    %9 = vector.broadcast %cst_7 : f32 to vector<16x32xf32>
    %10 = arith.mulf %9, %6 : vector<16x32xf32>
    %11 = arith.mulf %10, %6 : vector<16x32xf32>
    %12 = arith.mulf %11, %6 : vector<16x32xf32>
    %13 = arith.addf %6, %12 : vector<16x32xf32>
    %cst_8 = arith.constant 0.797884583 : f32
    %14 = vector.broadcast %cst_8 : f32 to vector<16x32xf32>
    %15 = arith.mulf %14, %13 : vector<16x32xf32>
    %16 = math.tanh %15 : vector<16x32xf32>
    %cst_9 = arith.constant 1.000000e+00 : f32
    %17 = vector.broadcast %cst_9 : f32 to vector<16x32xf32>
    %18 = arith.addf %17, %16 : vector<16x32xf32>
    %19 = arith.mulf %8, %18 : vector<16x32xf32>
    %c0_10 = arith.constant 0 : index
    %c0_11 = arith.constant 0 : index
    %c0_12 = arith.constant 0 : index
    %20 = vector.load %arg3[%c0_10, %c0_11, %c0_12] : memref<1x16x128xbf16, #tpu.memory_space<vmem>>, vector<1x16x128xbf16>
    %21 = vector.shape_cast %20 : vector<1x16x128xbf16> to vector<16x128xbf16>
    %cst_13 = arith.constant dense<0.000000e+00> : vector<16x32xf32>
    %22 = tpu.matmul %21, %0, %cst_13 {dimension_numbers = #tpu.dot_dimension_numbers<[1], [0], [0], [1], [0, 0, 1, 1], [], []>} : vector<16x128xbf16>, vector<128x32xbf16>, vector<16x32xf32> -> vector<16x32xf32>
    %23 = vector.broadcast %1 : vector<1x32xf32> to vector<16x32xf32>
    %24 = arith.addf %22, %23 : vector<16x32xf32>
    %cst_14 = arith.constant 5.000000e-01 : f32
    %25 = vector.broadcast %cst_14 : f32 to vector<16x32xf32>
    %26 = arith.mulf %25, %24 : vector<16x32xf32>
    %cst_15 = arith.constant 4.471500e-02 : f32
    %27 = vector.broadcast %cst_15 : f32 to vector<16x32xf32>
    %28 = arith.mulf %27, %24 : vector<16x32xf32>
    %29 = arith.mulf %28, %24 : vector<16x32xf32>
    %30 = arith.mulf %29, %24 : vector<16x32xf32>
    %31 = arith.addf %24, %30 : vector<16x32xf32>
    %cst_16 = arith.constant 0.797884583 : f32
    %32 = vector.broadcast %cst_16 : f32 to vector<16x32xf32>
    %33 = arith.mulf %32, %31 : vector<16x32xf32>
    %34 = math.tanh %33 : vector<16x32xf32>
    %cst_17 = arith.constant 1.000000e+00 : f32
    %35 = vector.broadcast %cst_17 : f32 to vector<16x32xf32>
    %36 = arith.addf %35, %34 : vector<16x32xf32>
    %37 = arith.mulf %26, %36 : vector<16x32xf32>
    %c0_18 = arith.constant 0 : index
    %c0_19 = arith.constant 0 : index
    %c0_20 = arith.constant 0 : index
    %38 = vector.load %arg4[%c0_18, %c0_19, %c0_20] : memref<1x16x128xbf16, #tpu.memory_space<vmem>>, vector<1x16x128xbf16>
    %39 = vector.shape_cast %38 : vector<1x16x128xbf16> to vector<16x128xbf16>
    %cst_21 = arith.constant dense<0.000000e+00> : vector<16x32xf32>
    %40 = tpu.matmul %39, %0, %cst_21 {dimension_numbers = #tpu.dot_dimension_numbers<[1], [0], [0], [1], [0, 0, 1, 1], [], []>} : vector<16x128xbf16>, vector<128x32xbf16>, vector<16x32xf32> -> vector<16x32xf32>
    %41 = vector.broadcast %1 : vector<1x32xf32> to vector<16x32xf32>
    %42 = arith.addf %40, %41 : vector<16x32xf32>
    %cst_22 = arith.constant 5.000000e-01 : f32
    %43 = vector.broadcast %cst_22 : f32 to vector<16x32xf32>
    %44 = arith.mulf %43, %42 : vector<16x32xf32>
    %cst_23 = arith.constant 4.471500e-02 : f32
    %45 = vector.broadcast %cst_23 : f32 to vector<16x32xf32>
    %46 = arith.mulf %45, %42 : vector<16x32xf32>
    %47 = arith.mulf %46, %42 : vector<16x32xf32>
    %48 = arith.mulf %47, %42 : vector<16x32xf32>
    %49 = arith.addf %42, %48 : vector<16x32xf32>
    %cst_24 = arith.constant 0.797884583 : f32
    %50 = vector.broadcast %cst_24 : f32 to vector<16x32xf32>
    %51 = arith.mulf %50, %49 : vector<16x32xf32>
    %52 = math.tanh %51 : vector<16x32xf32>
    %cst_25 = arith.constant 1.000000e+00 : f32
    %53 = vector.broadcast %cst_25 : f32 to vector<16x32xf32>
    %54 = arith.addf %53, %52 : vector<16x32xf32>
    %55 = arith.mulf %44, %54 : vector<16x32xf32>
    %56 = tpu.iota {dimensions = array<i32: 0>} : vector<16x1xi32>
    %c16_i32 = arith.constant 16 : i32
    %57 = arith.muli %arg1, %c16_i32 : i32
    %58 = vector.broadcast %57 : i32 to vector<16x1xi32>
    %59 = arith.addi %56, %58 : vector<16x1xi32>
    %c2_i32 = arith.constant 2 : i32
    %60 = vector.broadcast %c2_i32 : i32 to vector<16x1xi32>
    %61 = arith.muli %60, %59 : vector<16x1xi32>
    %c1_i32 = arith.constant 1 : i32
    %62 = vector.broadcast %c1_i32 : i32 to vector<16x1xi32>
    %63 = arith.subi %61, %62 : vector<16x1xi32>
    %c0_i32 = arith.constant 0 : i32
    %64 = vector.broadcast %c0_i32 : i32 to vector<16x1xi32>
    %65 = arith.cmpi sge, %63, %64 : vector<16x1xi32>
    %cst_26 = arith.constant 0.000000e+00 : f32
    %66 = vector.shape_cast %65 : vector<16x1xi1> to vector<16x1xi1>
    %67 = vector.broadcast %66 : vector<16x1xi1> to vector<16x32xi1>
    %68 = vector.broadcast %cst_26 : f32 to vector<16x32xf32>
    %69 = arith.select %67, %19, %68 : vector<16x32xi1>, vector<16x32xf32>
    %c2_i32_27 = arith.constant 2 : i32
    %70 = vector.broadcast %c2_i32_27 : i32 to vector<16x1xi32>
    %71 = arith.muli %70, %59 : vector<16x1xi32>
    %c1_i32_28 = arith.constant 1 : i32
    %72 = vector.broadcast %c1_i32_28 : i32 to vector<16x1xi32>
    %73 = arith.addi %71, %72 : vector<16x1xi32>
    %c64_i32 = arith.constant 64 : i32
    %74 = vector.broadcast %c64_i32 : i32 to vector<16x1xi32>
    %75 = arith.cmpi slt, %73, %74 : vector<16x1xi32>
    %cst_29 = arith.constant 0.000000e+00 : f32
    %76 = vector.shape_cast %75 : vector<16x1xi1> to vector<16x1xi1>
    %77 = vector.broadcast %76 : vector<16x1xi1> to vector<16x32xi1>
    %78 = vector.broadcast %cst_29 : f32 to vector<16x32xf32>
    %79 = arith.select %77, %55, %78 : vector<16x32xi1>, vector<16x32xf32>
    %80 = arith.truncf %69 : vector<16x32xf32> to vector<16x32xbf16>
    %c0_30 = arith.constant 0 : index
    %c0_31 = arith.constant 0 : index
    %c0_32 = arith.constant 0 : index
    %81 = vector.load %arg7[%c0_30, %c0_31, %c0_32] : memref<3x32x32xbf16, #tpu.memory_space<vmem>>, vector<1x32x32xbf16>
    %82 = vector.shape_cast %81 : vector<1x32x32xbf16> to vector<32x32xbf16>
    %cst_33 = arith.constant dense<0.000000e+00> : vector<16x32xf32>
    %83 = tpu.matmul %80, %82, %cst_33 {dimension_numbers = #tpu.dot_dimension_numbers<[1], [0], [0], [1], [0, 0, 1, 1], [], []>} : vector<16x32xbf16>, vector<32x32xbf16>, vector<16x32xf32> -> vector<16x32xf32>
    %84 = arith.truncf %37 : vector<16x32xf32> to vector<16x32xbf16>
    %c1 = arith.constant 1 : index
    %c0_34 = arith.constant 0 : index
    %c0_35 = arith.constant 0 : index
    %85 = vector.load %arg7[%c1, %c0_34, %c0_35] : memref<3x32x32xbf16, #tpu.memory_space<vmem>>, vector<1x32x32xbf16>
    %86 = vector.shape_cast %85 : vector<1x32x32xbf16> to vector<32x32xbf16>
    %cst_36 = arith.constant dense<0.000000e+00> : vector<16x32xf32>
    %87 = tpu.matmul %84, %86, %cst_36 {dimension_numbers = #tpu.dot_dimension_numbers<[1], [0], [0], [1], [0, 0, 1, 1], [], []>} : vector<16x32xbf16>, vector<32x32xbf16>, vector<16x32xf32> -> vector<16x32xf32>
    %88 = arith.addf %83, %87 : vector<16x32xf32>
    %89 = arith.truncf %79 : vector<16x32xf32> to vector<16x32xbf16>
    %c2 = arith.constant 2 : index
    %c0_37 = arith.constant 0 : index
    %c0_38 = arith.constant 0 : index
    %90 = vector.load %arg7[%c2, %c0_37, %c0_38] : memref<3x32x32xbf16, #tpu.memory_space<vmem>>, vector<1x32x32xbf16>
    %91 = vector.shape_cast %90 : vector<1x32x32xbf16> to vector<32x32xbf16>
    %cst_39 = arith.constant dense<0.000000e+00> : vector<16x32xf32>
    %92 = tpu.matmul %89, %91, %cst_39 {dimension_numbers = #tpu.dot_dimension_numbers<[1], [0], [0], [1], [0, 0, 1, 1], [], []>} : vector<16x32xbf16>, vector<32x32xbf16>, vector<16x32xf32> -> vector<16x32xf32>
    %93 = arith.addf %88, %92 : vector<16x32xf32>
    %c0_40 = arith.constant 0 : index
    %c0_41 = arith.constant 0 : index
    %94 = vector.load %arg8[%c0_40, %c0_41] : memref<1x32xf32, #tpu.memory_space<vmem>>, vector<1x32xf32>
    %95 = vector.broadcast %94 : vector<1x32xf32> to vector<16x32xf32>
    %96 = arith.addf %93, %95 : vector<16x32xf32>
    %cst_42 = arith.constant 5.000000e-01 : f32
    %97 = vector.broadcast %cst_42 : f32 to vector<16x32xf32>
    %98 = arith.mulf %97, %96 : vector<16x32xf32>
    %cst_43 = arith.constant 4.471500e-02 : f32
    %99 = vector.broadcast %cst_43 : f32 to vector<16x32xf32>
    %100 = arith.mulf %99, %96 : vector<16x32xf32>
    %101 = arith.mulf %100, %96 : vector<16x32xf32>
    %102 = arith.mulf %101, %96 : vector<16x32xf32>
    %103 = arith.addf %96, %102 : vector<16x32xf32>
    %cst_44 = arith.constant 0.797884583 : f32
    %104 = vector.broadcast %cst_44 : f32 to vector<16x32xf32>
    %105 = arith.mulf %104, %103 : vector<16x32xf32>
    %106 = math.tanh %105 : vector<16x32xf32>
    %cst_45 = arith.constant 1.000000e+00 : f32
    %107 = vector.broadcast %cst_45 : f32 to vector<16x32xf32>
    %108 = arith.addf %107, %106 : vector<16x32xf32>
    %109 = arith.mulf %98, %108 : vector<16x32xf32>
    %c0_46 = arith.constant 0 : index
    %c0_47 = arith.constant 0 : index
    %110 = vector.load %arg9[%c0_46, %c0_47] : memref<16x32xf32, #tpu.memory_space<vmem>>, vector<16x32xf32>
    %111 = arith.addf %109, %110 : vector<16x32xf32>
    %c0_48 = arith.constant 0 : index
    %c0_49 = arith.constant 0 : index
    %c0_50 = arith.constant 0 : index
    %112 = vector.load %arg10[%c0_48, %c0_49, %c0_50] : memref<1x16x32xf32, #tpu.memory_space<vmem>>, vector<1x16x32xf32>
    %113 = vector.shape_cast %112 : vector<1x16x32xf32> to vector<16x32xf32>
    %114 = vector.shape_cast %111 : vector<16x32xf32> to vector<1x16x32xf32>
    tpu.vector_store %arg10[%c0_48, %c0_49, %c0_50], %114 {strides = array<i32>} : memref<1x16x32xf32, #tpu.memory_space<vmem>>, vector<1x16x32xf32>,
    return
  }
  func.func @transform_0(%arg0: i32, %arg1: i32) -> (i32, i32, i32) {
    %c0_i32 = arith.constant 0 : i32
    %c0_i32_0 = arith.constant 0 : i32
    return %arg0, %arg1, %c0_i32 : i32, i32, i32
  }
  func.func @transform_1(%arg0: i32, %arg1: i32) -> (i32, i32, i32) {
    %c0_i32 = arith.constant 0 : i32
    %c0_i32_0 = arith.constant 0 : i32
    return %arg0, %arg1, %c0_i32 : i32, i32, i32
  }
  func.func @transform_2(%arg0: i32, %arg1: i32) -> (i32, i32, i32) {
    %c0_i32 = arith.constant 0 : i32
    %c0_i32_0 = arith.constant 0 : i32
    return %arg0, %arg1, %c0_i32 : i32, i32, i32
  }
  func.func @transform_3(%arg0: i32, %arg1: i32) -> (i32, i32) {
    %c0_i32 = arith.constant 0 : i32
    %c0_i32_0 = arith.constant 0 : i32
    %c0_i32_1 = arith.constant 0 : i32
    return %c0_i32, %c0_i32_0 : i32, i32
  }
  func.func @transform_4(%arg0: i32, %arg1: i32) -> (i32, i32) {
    %c0_i32 = arith.constant 0 : i32
    %c0_i32_0 = arith.constant 0 : i32
    %c0_i32_1 = arith.constant 0 : i32
    return %c0_i32, %c0_i32_0 : i32, i32
  }
  func.func @transform_5(%arg0: i32, %arg1: i32) -> (i32, i32, i32) {
    %c0_i32 = arith.constant 0 : i32
    %c0_i32_0 = arith.constant 0 : i32
    %c0_i32_1 = arith.constant 0 : i32
    %c0_i32_2 = arith.constant 0 : i32
    return %c0_i32, %c0_i32_0, %c0_i32_1 : i32, i32, i32
  }
  func.func @transform_6(%arg0: i32, %arg1: i32) -> (i32, i32) {
    %c0_i32 = arith.constant 0 : i32
    %c0_i32_0 = arith.constant 0 : i32
    %c0_i32_1 = arith.constant 0 : i32
    return %c0_i32, %c0_i32_0 : i32, i32
  }
  func.func @transform_7(%arg0: i32, %arg1: i32) -> (i32, i32) {
    %c0_i32 = arith.constant 0 : i32
    %c0_i32_0 = arith.constant 0 : i32
    return %arg1, %c0_i32 : i32, i32
  }
  func.func @transform_8(%arg0: i32, %arg1: i32) -> (i32, i32, i32) {
    %c0_i32 = arith.constant 0 : i32
    %c0_i32_0 = arith.constant 0 : i32
    return %arg0, %arg1, %c0_i32 : i32, i32, i32
  }
}

</mosaic_0001>

<llo_original>
// kernel: tpu_custom_call.1
$region0: #{tpu_custom_call.1}
  #allocation0 [shape = 'u32[]', space=smem, size = 0x4, offset = 0x4, fixed_abs, tag = 'smem constant byte address 0x4 - core index']
  #allocation1 [shape = 'u32[144,128]{1,0:T(1,128)}', space=vmem, size = 0x12000, scoped, tag = 'internal scratch']
  %s0 = inlined_call_operand.vmem [shape: bf16[2,32,128], index: 0, kind: input, shape index: {}]
  %s1 = inlined_call_operand.hbm [shape: bf16[2,32,128], index: 1, kind: input, shape index: {}]
  %s2 = inlined_call_operand.hbm [shape: bf16[2,32,128], index: 2, kind: input, shape index: {}]
  %s3 = inlined_call_operand.vmem [shape: bf16[128,32], index: 3, kind: input, shape index: {}]
  %s4 = inlined_call_operand.vmem [shape: f32[1,32], index: 4, kind: input, shape index: {}]
  %s5 = inlined_call_operand.vmem [shape: bf16[3,32,32], index: 5, kind: input, shape index: {}]
  %s6 = inlined_call_operand.vmem [shape: f32[1,32], index: 6, kind: input, shape index: {}]
  %s7 = inlined_call_operand.hbm [shape: f32[32,32], index: 7, kind: input, shape index: {}]
  %s8 = inlined_call_operand.hbm [shape: f32[2,32,32], index: 8, kind: output, shape index: {}]
  %s9 = sld [smem:[#allocation0]]
  $region77: #{tpu_custom_call.1} parent=0
    _
  %s11 = ssub.s32 1, %s9
  %s12 = scalar_select 0, %s11, %s9
  $region1: #{tpu_custom_call.1} parent=0
    #allocation2 [shape = 'u8[8192]{0}', space=vmem, size = 0x2000, scoped, tag = 'input window, operand 1']
    #allocation3 [shape = 's32[2]{0}', space=sflag, size = 0x8, scoped, tag = 'scoped memory for tpu_custom_call.1']
    #allocation4 [shape = 's32[2]{0}', space=sflag, size = 0x8, scoped, tag = 'scoped memory for tpu_custom_call.1']
    #allocation5 [shape = 'u8[8192]{0}', space=vmem, size = 0x2000, scoped, tag = 'input window, operand 2']
    #allocation6 [shape = 's32[2]{0}', space=sflag, size = 0x8, scoped, tag = 'scoped memory for tpu_custom_call.1']
    #allocation7 [shape = 'u8[16384]{0}', space=vmem, size = 0x4000, scoped, tag = 'input window, operand 7']
    #allocation8 [shape = 'u8[16384]{0}', space=vmem, size = 0x4000, scoped, tag = 'output window, operand 0']
    %13 = vsyncpa [#allocation3], 0
    %s14 = scalar_lea.sflag [#allocation3], 1
    %15 = vsyncpa %s14, 0
    %16 = vsyncpa [#allocation6], 0
    %s17 = scalar_lea.sflag [#allocation6], 1
    %18 = vsyncpa %s17, 0
    %19 = vsyncpa [#allocation4], 0
    %s20 = scalar_lea.sflag [#allocation4], 1
    %21 = vsyncpa %s20, 0
    loop: start=0, step=1, limit=6
    $region2: #{tpu_custom_call.1} parent=1 // loop_pre_header
      _
    $region3: #{tpu_custom_call.1} parent=1 // loop_header
      %s23 = sphi 0, %s27
      %p24 = scmp.ge.s32.totalorder %s23, 6
      %s30 = sphi 0, %s42
      %s31 = sphi 0, %s38
      %s32 = sphi 0, %s30
      %s33 = sphi 0, %s31
      %s34 = sphi 0, %s32
      %s35 = sphi 0, %s33
      %s47 = sphi 0, %s49
      %s50 = sphi 0, %s47
      %s51 = sphi 0, %s50
      %s67 = sphi 0, %s51
      %s75 = sphi 0, %s77
      %s78 = sphi 0, %s75
      %s79 = sphi 0, %s78
      %s95 = sphi 0, %s79
      %s103 = sphi 0, %s105
      %s106 = sphi 0, %s103
      %s107 = sphi 0, %s106
      %s123 = sphi 0, %s107
      %s127 = sphi 0, %s127
      %s129 = sphi 0, %s127
      %s130 = sphi 0, %s129
      %s144 = sphi 0, %s130
      %s148 = sphi 0, %s148
      %s150 = sphi 0, %s148
      %s151 = sphi 0, %s150
      %s165 = sphi 0, %s151
      %s169 = sphi 0, %s169
      %s171 = sphi 0, %s169
      %s172 = sphi 0, %s171
      %s186 = sphi 0, %s172
      %s190 = sphi 0, %s190
      %s192 = sphi 0, %s190
      %s193 = sphi 0, %s192
      %s207 = sphi 0, %s193
      %s213 = sphi 0, %s215
      %s216 = sphi 0, %s213
      %s217 = sphi 0, %s216
      %s233 = sphi 0, %s217
      %s241 = sphi 0, %s243
      %s244 = sphi 0, %s241
      %s245 = sphi 0, %s244
      %s261 = sphi 0, %s245
    $region4: #{tpu_custom_call.1} parent=1 // loop_header_branch
      %26 = sbr.rel (%p24) target = $region8
    $region5: #{tpu_custom_call.1} parent=1 // loop_body
      %s28 = ssub.s32 %s23, 1
      %s29 = ssub.s32 %s23, 2
      %s36 = sadd.s32 1, %s31
      %p37 = scmp.ge.s32.totalorder %s36, 2
      %s38 = scalar_select %p37, 0, %s36
      %s39 = sadd.s32 1, %s30
      %s40 = scalar_select %p37, %s39, %s30
      %p41 = scmp.ge.s32.totalorder %s40, 2
      %s42 = scalar_select %p41, 0, %s40
      %s43 = ssub.s32 %s30, %s42
      %s44 = ssub.s32 %s31, %s38
      %s45 = sor.u32 %s43, %s44
      %p46 = scmp.eq.s32.totalorder %s45, 0
      %s48 = sadd.s32 %s47, 1
      %s49 = scalar_select %p46, %s47, %s48
      %p52 = pneg %p46
      %p53 = scmp.eq.s32.totalorder %s23, 3
      %p54 = por %p52, %p53
      %p55 = scmp.ne.s32.totalorder %s47, %s50
      %p56 = scmp.eq.s32.totalorder %s23, 0
      %p57 = por %p55, %p56
      %p58 = scmp.ne.s32.totalorder %s47, %s50
      %p59 = scmp.eq.s32.totalorder %s28, 3
      %p60 = por %p58, %p59
      %p61 = scmp.ne.s32.totalorder %s50, %s51
      %p62 = scmp.eq.s32.totalorder %s28, 0
      %p63 = por %p61, %p62
      %p64 = scmp.ne.s32.totalorder %s50, %s51
      %p65 = scmp.eq.s32.totalorder %s29, 3
      %p66 = por %p64, %p65
      %p68 = scmp.ne.s32.totalorder %s51, %s67
      %p69 = scmp.eq.s32.totalorder %s29, 0
      %p70 = por %p68, %p69
      %s71 = ssub.s32 %s30, %s42
      %s72 = ssub.s32 %s31, %s38
      %s73 = sor.u32 %s71, %s72
      %p74 = scmp.eq.s32.totalorder %s73, 0
      %s76 = sadd.s32 %s75, 1
      %s77 = scalar_select %p74, %s75, %s76
      %p80 = pneg %p74
      %p81 = scmp.eq.s32.totalorder %s23, 3
      %p82 = por %p80, %p81
      %p83 = scmp.ne.s32.totalorder %s75, %s78
      %p84 = scmp.eq.s32.totalorder %s23, 0
      %p85 = por %p83, %p84
      %p86 = scmp.ne.s32.totalorder %s75, %s78
      %p87 = scmp.eq.s32.totalorder %s28, 3
      %p88 = por %p86, %p87
      %p89 = scmp.ne.s32.totalorder %s78, %s79
      %p90 = scmp.eq.s32.totalorder %s28, 0
      %p91 = por %p89, %p90
      %p92 = scmp.ne.s32.totalorder %s78, %s79
      %p93 = scmp.eq.s32.totalorder %s29, 3
      %p94 = por %p92, %p93
      %p96 = scmp.ne.s32.totalorder %s79, %s95
      %p97 = scmp.eq.s32.totalorder %s29, 0
      %p98 = por %p96, %p97
      %s99 = ssub.s32 %s30, %s42
      %s100 = ssub.s32 %s31, %s38
      %s101 = sor.u32 %s99, %s100
      %p102 = scmp.eq.s32.totalorder %s101, 0
      %s104 = sadd.s32 %s103, 1
      %s105 = scalar_select %p102, %s103, %s104
      %p108 = pneg %p102
      %p109 = scmp.eq.s32.totalorder %s23, 3
      %p110 = por %p108, %p109
      %p111 = scmp.ne.s32.totalorder %s103, %s106
      %p112 = scmp.eq.s32.totalorder %s23, 0
      %p113 = por %p111, %p112
      %p114 = scmp.ne.s32.totalorder %s103, %s106
      %p115 = scmp.eq.s32.totalorder %s28, 3
      %p116 = por %p114, %p115
      %p117 = scmp.ne.s32.totalorder %s106, %s107
      %p118 = scmp.eq.s32.totalorder %s28, 0
      %p119 = por %p117, %p118
      %p120 = scmp.ne.s32.totalorder %s106, %s107
      %p121 = scmp.eq.s32.totalorder %s29, 3
      %p122 = por %p120, %p121
      %p124 = scmp.ne.s32.totalorder %s107, %s123
      %p125 = scmp.eq.s32.totalorder %s29, 0
      %p126 = por %p124, %p125
      %s128 = sadd.s32 %s127, 1
      %p131 = scmp.eq.s32.totalorder %s23, 3
      %p132 = scmp.ne.s32.totalorder %s127, %s129
      %p133 = scmp.eq.s32.totalorder %s23, 0
      %p134 = por %p132, %p133
      %p135 = scmp.ne.s32.totalorder %s127, %s129
      %p136 = scmp.eq.s32.totalorder %s28, 3
      %p137 = por %p135, %p136
      %p138 = scmp.ne.s32.totalorder %s129, %s130
      %p139 = scmp.eq.s32.totalorder %s28, 0
      %p140 = por %p138, %p139
      %p141 = scmp.ne.s32.totalorder %s129, %s130
      %p142 = scmp.eq.s32.totalorder %s29, 3
      %p143 = por %p141, %p142
      %p145 = scmp.ne.s32.totalorder %s130, %s144
      %p146 = scmp.eq.s32.totalorder %s29, 0
      %p147 = por %p145, %p146
      %s149 = sadd.s32 %s148, 1
      %p152 = scmp.eq.s32.totalorder %s23, 3
      %p153 = scmp.ne.s32.totalorder %s148, %s150
      %p154 = scmp.eq.s32.totalorder %s23, 0
      %p155 = por %p153, %p154
      %p156 = scmp.ne.s32.totalorder %s148, %s150
      %p157 = scmp.eq.s32.totalorder %s28, 3
      %p158 = por %p156, %p157
      %p159 = scmp.ne.s32.totalorder %s150, %s151
      %p160 = scmp.eq.s32.totalorder %s28, 0
      %p161 = por %p159, %p160
      %p162 = scmp.ne.s32.totalorder %s150, %s151
      %p163 = scmp.eq.s32.totalorder %s29, 3
      %p164 = por %p162, %p163
      %p166 = scmp.ne.s32.totalorder %s151, %s165
      %p167 = scmp.eq.s32.totalorder %s29, 0
      %p168 = por %p166, %p167
      %s170 = sadd.s32 %s169, 1
      %p173 = scmp.eq.s32.totalorder %s23, 3
      %p174 = scmp.ne.s32.totalorder %s169, %s171
      %p175 = scmp.eq.s32.totalorder %s23, 0
      %p176 = por %p174, %p175
      %p177 = scmp.ne.s32.totalorder %s169, %s171
      %p178 = scmp.eq.s32.totalorder %s28, 3
      %p179 = por %p177, %p178
      %p180 = scmp.ne.s32.totalorder %s171, %s172
      %p181 = scmp.eq.s32.totalorder %s28, 0
      %p182 = por %p180, %p181
      %p183 = scmp.ne.s32.totalorder %s171, %s172
      %p184 = scmp.eq.s32.totalorder %s29, 3
      %p185 = por %p183, %p184
      %p187 = scmp.ne.s32.totalorder %s172, %s186
      %p188 = scmp.eq.s32.totalorder %s29, 0
      %p189 = por %p187, %p188
      %s191 = sadd.s32 %s190, 1
      %p194 = scmp.eq.s32.totalorder %s23, 3
      %p195 = scmp.ne.s32.totalorder %s190, %s192
      %p196 = scmp.eq.s32.totalorder %s23, 0
      %p197 = por %p195, %p196
      %p198 = scmp.ne.s32.totalorder %s190, %s192
      %p199 = scmp.eq.s32.totalorder %s28, 3
      %p200 = por %p198, %p199
      %p201 = scmp.ne.s32.totalorder %s192, %s193
      %p202 = scmp.eq.s32.totalorder %s28, 0
      %p203 = por %p201, %p202
      %p204 = scmp.ne.s32.totalorder %s192, %s193
      %p205 = scmp.eq.s32.totalorder %s29, 3
      %p206 = por %p204, %p205
      %p208 = scmp.ne.s32.totalorder %s193, %s207
      %p209 = scmp.eq.s32.totalorder %s29, 0
      %p210 = por %p208, %p209
      %s211 = ssub.s32 %s31, %s38
      %p212 = scmp.eq.s32.totalorder %s211, 0
      %s214 = sadd.s32 %s213, 1
      %s215 = scalar_select %p212, %s213, %s214
      %p218 = pneg %p212
      %p219 = scmp.eq.s32.totalorder %s23, 3
      %p220 = por %p218, %p219
      %p221 = scmp.ne.s32.totalorder %s213, %s216
      %p222 = scmp.eq.s32.totalorder %s23, 0
      %p223 = por %p221, %p222
      %p224 = scmp.ne.s32.totalorder %s213, %s216
      %p225 = scmp.eq.s32.totalorder %s28, 3
      %p226 = por %p224, %p225
      %p227 = scmp.ne.s32.totalorder %s216, %s217
      %p228 = scmp.eq.s32.totalorder %s28, 0
      %p229 = por %p227, %p228
      %p230 = scmp.ne.s32.totalorder %s216, %s217
      %p231 = scmp.eq.s32.totalorder %s29, 3
      %p232 = por %p230, %p231
      %p234 = scmp.ne.s32.totalorder %s217, %s233
      %p235 = scmp.eq.s32.totalorder %s29, 0
      %p236 = por %p234, %p235
      %s237 = ssub.s32 %s30, %s42
      %s238 = ssub.s32 %s31, %s38
      %s239 = sor.u32 %s237, %s238
      %p240 = scmp.eq.s32.totalorder %s239, 0
      %s242 = sadd.s32 %s241, 1
      %s243 = scalar_select %p240, %s241, %s242
      %p246 = pneg %p240
      %p247 = scmp.eq.s32.totalorder %s23, 3
      %p248 = por %p246, %p247
      %p249 = scmp.ne.s32.totalorder %s241, %s244
      %p250 = scmp.eq.s32.totalorder %s23, 0
      %p251 = por %p249, %p250
      %p252 = scmp.ne.s32.totalorder %s241, %s244
      %p253 = scmp.eq.s32.totalorder %s28, 3
      %p254 = por %p252, %p253
      %p255 = scmp.ne.s32.totalorder %s244, %s245
      %p256 = scmp.eq.s32.totalorder %s28, 0
      %p257 = por %p255, %p256
      %p258 = scmp.ne.s32.totalorder %s244, %s245
      %p259 = scmp.eq.s32.totalorder %s29, 3
      %p260 = por %p258, %p259
      %p262 = scmp.ne.s32.totalorder %s245, %s261
      %p263 = scmp.eq.s32.totalorder %s29, 0
      %p264 = por %p262, %p263
      %p265 = scmp.le.s32.totalorder 1, %s23
      %p266 = scmp.lt.s32.totalorder %s23, 5
      %p267 = pnand %p265, %p266
      %p268 = pneg %p267
      // Predicated region
      $region9: #{tpu_custom_call.1} parent=5 // pred_check
        _
      $region10: #{tpu_custom_call.1} parent=5 // pred_check_branch
        %270 = sbr.rel (%p267) target = $region12
      $region11: #{tpu_custom_call.1} parent=5 // pred_region
        %s271 = ssub.s32 %s23, 1
        // Predicated region
        $region13: #{tpu_custom_call.1} parent=11 // pred_check
          %p272 = pneg %p140
        $region14: #{tpu_custom_call.1} parent=11 // pred_check_branch
          %274 = sbr.rel (%p272) target = $region16
        $region15: #{tpu_custom_call.1} parent=11 // pred_region
          _
        $region16: #{tpu_custom_call.1} parent=11 // pred_fallthru
          _
        // Predicated region
        $region17: #{tpu_custom_call.1} parent=11 // pred_check
          %p275 = pneg %p161
        $region18: #{tpu_custom_call.1} parent=11 // pred_check_branch
          %277 = sbr.rel (%p275) target = $region20
        $region19: #{tpu_custom_call.1} parent=11 // pred_region
          _
        $region20: #{tpu_custom_call.1} parent=11 // pred_fallthru
          _
        // Predicated region
        $region21: #{tpu_custom_call.1} parent=11 // pred_check
          %p278 = pneg %p182
        $region22: #{tpu_custom_call.1} parent=11 // pred_check_branch
          %280 = sbr.rel (%p278) target = $region24
        $region23: #{tpu_custom_call.1} parent=11 // pred_region
          _
        $region24: #{tpu_custom_call.1} parent=11 // pred_fallthru
          _
        // Predicated region
        $region25: #{tpu_custom_call.1} parent=11 // pred_check
          %p281 = pneg %p203
        $region26: #{tpu_custom_call.1} parent=11 // pred_check_branch
          %283 = sbr.rel (%p281) target = $region28
        $region27: #{tpu_custom_call.1} parent=11 // pred_region
          _
        $region28: #{tpu_custom_call.1} parent=11 // pred_fallthru
          _
      $region12: #{tpu_custom_call.1} parent=5 // pred_fallthru
        _
      %p284 = scmp.lt.s32.totalorder %s23, 4
      // Predicated region
      $region29: #{tpu_custom_call.1} parent=5 // pred_check
        %p285 = pneg %p284
      $region30: #{tpu_custom_call.1} parent=5 // pred_check_branch
        %287 = sbr.rel (%p285) target = $region32
      $region31: #{tpu_custom_call.1} parent=5 // pred_region
        // Predicated region
        $region33: #{tpu_custom_call.1} parent=31 // pred_check
          %p288 = pneg %p57
        $region34: #{tpu_custom_call.1} parent=31 // pred_check_branch
          %290 = sbr.rel (%p288) target = $region36
        $region35: #{tpu_custom_call.1} parent=31 // pred_region
          %s291 = smul.u32 2, %s31
          %p292 = scmp.lt.s32.totalorder %s30, 1
          %s293 = scalar_select %p292, %s30, 1
          %p294 = scmp.lt.s32.totalorder %s291, 3
          %s295 = scalar_select %p294, %s291, 3
          %s296 = smul.addr %s293, 4
          %s297 = sadd.s32 %s295, %s296
          %s298 = smul.addr %s297, 4
          %s299 = scalar_lea.vmem %s0, %s298
          %s300 = smul.u32 2, %s31
        $region36: #{tpu_custom_call.1} parent=31 // pred_fallthru
          _
        // Predicated region
        $region37: #{tpu_custom_call.1} parent=31 // pred_check
          %p301 = pneg %p85
        $region38: #{tpu_custom_call.1} parent=31 // pred_check_branch
          %303 = sbr.rel (%p301) target = $region40
        $region39: #{tpu_custom_call.1} parent=31 // pred_region
          %s304 = sand.u32 %s75, 1
          %s305 = scalar_lea.sflag [#allocation3], %s304
          %s306 = sand.u32 %s75, 1
          %s307 = smul.addr %s306, 8
          %s308 = scalar_lea.vmem [#allocation2], %s307
          %s309 = smul.u32 2, %s31
          %s311 = ssub.s32 128, 128
          %312 = vsyncadd %s305, %s311
          %s313 = smul.addr %s30, 4
          %s314 = sadd.s32 %s309, %s313
          %s315 = smul.addr %s314, 64
          %s316 = scalar_lea.hbm %s1, %s315
          %s317 = sshll.u32 %s308, 4
          %s318 = int_to_ptr.vmem [resolvable:$true] %s317
          %323 = dma.hbm_to_vmem [thread:$0]  %s316, 128, %s318, %s305, 64, 64, 4
        $region40: #{tpu_custom_call.1} parent=31 // pred_fallthru
          _
        // Predicated region
        $region41: #{tpu_custom_call.1} parent=31 // pred_check
          %p324 = pneg %p113
        $region42: #{tpu_custom_call.1} parent=31 // pred_check_branch
          %326 = sbr.rel (%p324) target = $region44
        $region43: #{tpu_custom_call.1} parent=31 // pred_region
          %s327 = sand.u32 %s23, 1
          %s328 = scalar_lea.sflag [#allocation6], %s327
          %s329 = sand.u32 %s103, 1
          %s330 = smul.addr %s329, 8
          %s331 = scalar_lea.vmem [#allocation5], %s330
          %s332 = smul.u32 2, %s31
          %s334 = ssub.s32 128, 128
          %335 = vsyncadd %s328, %s334
          %s336 = smul.addr %s30, 4
          %s337 = sadd.s32 %s332, %s336
          %s338 = smul.addr %s337, 64
          %s339 = scalar_lea.hbm %s2, %s338
          %s340 = sshll.u32 %s331, 4
          %s341 = int_to_ptr.vmem [resolvable:$true] %s340
          %346 = dma.hbm_to_vmem [thread:$0]  %s339, 128, %s341, %s328, 64, 64, 4
        $region44: #{tpu_custom_call.1} parent=31 // pred_fallthru
          _
        // Predicated region
        $region45: #{tpu_custom_call.1} parent=31 // pred_check
          %p347 = pneg %p223
        $region46: #{tpu_custom_call.1} parent=31 // pred_check_branch
          %349 = sbr.rel (%p347) target = $region48
        $region47: #{tpu_custom_call.1} parent=31 // pred_region
          %s350 = sand.u32 %s23, 1
          %s351 = scalar_lea.sflag [#allocation6], %s350
          %s352 = sand.u32 %s213, 1
          %s353 = smul.addr %s352, 16
          %s354 = scalar_lea.vmem [#allocation7], %s353
          %s355 = smul.u32 2, %s31
          %s357 = ssub.s32 256, 256
          %358 = vsyncadd %s351, %s357
          %s359 = smul.addr %s355, 128
          %s360 = scalar_lea.hbm %s7, %s359
          %s361 = sshll.u32 %s354, 4
          %s362 = int_to_ptr.vmem [resolvable:$true] %s361
          %367 = dma.hbm_to_vmem [thread:$0]  %s360, 256, %s362, %s351, 128, 128, 8
        $region48: #{tpu_custom_call.1} parent=31 // pred_fallthru
          _
      $region32: #{tpu_custom_call.1} parent=5 // pred_fallthru
        _
      %p368 = scmp.le.s32.totalorder 1, %s23
      %p369 = scmp.lt.s32.totalorder %s23, 5
      %p370 = pnand %p368, %p369
      %p371 = pneg %p370
      // Predicated region
      $region49: #{tpu_custom_call.1} parent=5 // pred_check
        _
      $region50: #{tpu_custom_call.1} parent=5 // pred_check_branch
        %373 = sbr.rel (%p370) target = $region52
      $region51: #{tpu_custom_call.1} parent=5 // pred_region
        %s374 = ssub.s32 %s23, 1
        %s375 = sand.u32 %s78, 1
        %s376 = scalar_lea.sflag [#allocation3], %s375
        %s377 = sand.u32 %s78, 1
        %s378 = smul.addr %s377, 8
        %s379 = scalar_lea.vmem [#allocation2], %s378
        // Predicated region
        $region53: #{tpu_custom_call.1} parent=51 // pred_check
          %p380 = pneg %p91
        $region54: #{tpu_custom_call.1} parent=51 // pred_check_branch
          %382 = sbr.rel (%p380) target = $region56
        $region55: #{tpu_custom_call.1} parent=51 // pred_region
          %383 = dma.done %s376, 128
        $region56: #{tpu_custom_call.1} parent=51 // pred_fallthru
          _
        %s384 = sand.u32 %s28, 1
        %s385 = scalar_lea.sflag [#allocation6], %s384
        %s386 = sand.u32 %s106, 1
        %s387 = smul.addr %s386, 8
        %s388 = scalar_lea.vmem [#allocation5], %s387
        // Predicated region
        $region57: #{tpu_custom_call.1} parent=51 // pred_check
          %p389 = pneg %p119
        $region58: #{tpu_custom_call.1} parent=51 // pred_check_branch
          %391 = sbr.rel (%p389) target = $region60
        $region59: #{tpu_custom_call.1} parent=51 // pred_region
          %392 = dma.done %s385, 128
        $region60: #{tpu_custom_call.1} parent=51 // pred_fallthru
          _
        %s393 = sand.u32 %s28, 1
        %s394 = scalar_lea.sflag [#allocation6], %s393
        %s395 = sand.u32 %s216, 1
        %s396 = smul.addr %s395, 16
        %s397 = scalar_lea.vmem [#allocation7], %s396
        // Predicated region
        $region61: #{tpu_custom_call.1} parent=51 // pred_check
          %p398 = pneg %p229
        $region62: #{tpu_custom_call.1} parent=51 // pred_check_branch
          %400 = sbr.rel (%p398) target = $region64
        $region63: #{tpu_custom_call.1} parent=51 // pred_region
          %401 = dma.done %s394, 256
        $region64: #{tpu_custom_call.1} parent=51 // pred_fallthru
          _
        %s402 = smul.u32 2, %s33
        %p403 = scmp.lt.s32.totalorder %s32, 1
        %s404 = scalar_select %p403, %s32, 1
        %p405 = scmp.lt.s32.totalorder %s402, 3
        %s406 = scalar_select %p405, %s402, 3
        %s407 = smul.addr %s404, 4
        %s408 = sadd.s32 %s406, %s407
        %s409 = smul.addr %s408, 4
        %s410 = scalar_lea.vmem %s0, %s409
        %p411 = pneg %p63
        %p412 = pneg %p60
        %s413 = sand.u32 %s78, 1
        %s414 = scalar_lea.sflag [#allocation3], %s413
        %s415 = sand.u32 %s78, 1
        %s416 = smul.addr %s415, 8
        %s417 = scalar_lea.vmem [#allocation2], %s416
        %p418 = pneg %p91
        %p419 = pneg %p88
        %s420 = sand.u32 %s28, 1
        %s421 = scalar_lea.sflag [#allocation6], %s420
        %s422 = sand.u32 %s106, 1
        %s423 = smul.addr %s422, 8
        %s424 = scalar_lea.vmem [#allocation5], %s423
        %p425 = pneg %p119
        %p426 = pneg %p116
        %p427 = pneg %p140
        %p428 = pneg %p137
        %p429 = pneg %p161
        %p430 = pneg %p158
        %p431 = pneg %p182
        %p432 = pneg %p179
        %p433 = pneg %p203
        %p434 = pneg %p200
        %s435 = sand.u32 %s28, 1
        %s436 = scalar_lea.sflag [#allocation6], %s435
        %s437 = sand.u32 %s216, 1
        %s438 = smul.addr %s437, 16
        %s439 = scalar_lea.vmem [#allocation7], %s438
        %p440 = pneg %p229
        %p441 = pneg %p226
        %p442 = pneg %p257
        %p443 = pneg %p254
        %s444 = sand.u32 %s244, 1
        %s445 = scalar_lea.sflag [#allocation4], %s444
        %s446 = sand.u32 %s244, 1
        %s447 = smul.addr %s446, 16
        %s448 = scalar_lea.vmem [#allocation8], %s447
        %s449 = smul.u32 2, %s33
        %p450 = scmp.lt.s32.totalorder %s32, 1
        %s451 = scalar_select %p450, %s32, 1
        %p452 = scmp.lt.s32.totalorder %s449, 3
        %s453 = scalar_select %p452, %s449, 3
        %s454 = smul.addr %s451, 4
        %s455 = sadd.s32 %s453, %s454
        %s456 = smul.addr %s455, 4
        %s457 = scalar_lea.vmem %s0, %s456
        %s458 = smul.u32 2, %s33
        %s459 = smul.u32 2, %s33
        %s460 = smul.u32 2, %s33
        %s461 = smul.u32 2, %s33
        %s462 = smul.u32 2, %s33
        %v464 = vld [vmem:[%s3] sm:$0xf]
        %v465 = vld [vmem:[%s3 + $0x4] sm:$0xf]
        %v466 = vld [vmem:[%s3 + $0x8] sm:$0xf]
        %v467 = vld [vmem:[%s3 + $0xc] sm:$0xf]
        %v468 = vld [vmem:[%s3 + $0x10] sm:$0xf]
        %v469 = vld [vmem:[%s3 + $0x14] sm:$0xf]
        %v470 = vld [vmem:[%s3 + $0x18] sm:$0xf]
        %v471 = vld [vmem:[%s3 + $0x1c] sm:$0xf]
        %v472 = vld [vmem:[%s3 + $0x20] sm:$0xf]
        %v473 = vld [vmem:[%s3 + $0x24] sm:$0xf]
        %v474 = vld [vmem:[%s3 + $0x28] sm:$0xf]
        %v475 = vld [vmem:[%s3 + $0x2c] sm:$0xf]
        %v476 = vld [vmem:[%s3 + $0x30] sm:$0xf]
        %v477 = vld [vmem:[%s3 + $0x34] sm:$0xf]
        %v478 = vld [vmem:[%s3 + $0x38] sm:$0xf]
        %v479 = vld [vmem:[%s3 + $0x3c] sm:$0xf]
        %v480 = vld [vmem:[%s4] sm:$0x1]
        %v481 = vld [vmem:[%s457] sm:$0xf]
        %v482 = vld [vmem:[%s457 + $0x4] sm:$0xf]
        %v484 = vlaneseq
        %v485 = vshrl.u32 %v484, 7
        %v486 = vsub.s32 0, %v485
        %v487 = vrot.slane %v480, %v486
        %v491 = vunpack.c.l.b16 %v481
        %v492 = vunpack.c.l.b16 %v482
        %v493 = vpack.c.b16 %v492, %v491
        %v511 = vunpack.c.l.b16 %v464
        %v512 = vunpack.c.l.b16 %v465
        %v513 = vunpack.c.l.b16 %v466
        %v514 = vunpack.c.l.b16 %v467
        %v515 = vunpack.c.l.b16 %v468
        %v516 = vunpack.c.l.b16 %v469
        %v517 = vunpack.c.l.b16 %v470
        %v518 = vunpack.c.l.b16 %v471
        %v519 = vunpack.c.l.b16 %v472
        %v520 = vunpack.c.l.b16 %v473
        %v521 = vunpack.c.l.b16 %v474
        %v522 = vunpack.c.l.b16 %v475
        %v523 = vunpack.c.l.b16 %v476
        %v524 = vunpack.c.l.b16 %v477
        %v525 = vunpack.c.l.b16 %v478
        %v526 = vunpack.c.l.b16 %v479
        %v527 = vpack.c.b16 %v512, %v511
        %v528 = vpack.c.b16 %v514, %v513
        %v529 = vpack.c.b16 %v516, %v515
        %v530 = vpack.c.b16 %v518, %v517
        %v531 = vpack.c.b16 %v520, %v519
        %v532 = vpack.c.b16 %v522, %v521
        %v533 = vpack.c.b16 %v524, %v523
        %v534 = vpack.c.b16 %v526, %v525
        %543 = vmatprep.subr.bf16.mxu0 0
        %544 = vmatpush1.bf16.msra.mxu0 %v527
        %545 = vmatprep.subr.bf16.mxu0 0
        %546 = vmatpush1.bf16.msra.mxu0 %v528
        %547 = vmatprep.subr.bf16.mxu0 0
        %548 = vmatpush1.bf16.msra.mxu0 %v529
        %549 = vmatprep.subr.bf16.mxu0 0
        %550 = vmatpush1.bf16.msra.mxu0 %v530
        %551 = vmatprep.subr.bf16.mxu0 0
        %552 = vmatpush1.bf16.msra.mxu0 %v531
        %553 = vmatprep.subr.bf16.mxu0 0
        %554 = vmatpush1.bf16.msra.mxu0 %v532
        %555 = vmatprep.subr.bf16.mxu0 0
        %556 = vmatpush1.bf16.msra.mxu0 %v533
        %557 = vmatprep.subr.bf16.mxu0 0
        %558 = vmatpush1.bf16.msra.mxu0 %v534
        %559 = vmatprep.subr.bf16.mxu0 0
        %560 = vmatpush1.bf16.msra.mxu0 0
        %561 = vmatprep.subr.bf16.mxu0 0
        %562 = vmatpush1.bf16.msra.mxu0 0
        %563 = vmatprep.subr.bf16.mxu0 0
        %564 = vmatpush1.bf16.msra.mxu0 0
        %565 = vmatprep.subr.bf16.mxu0 0
        %566 = vmatpush1.bf16.msra.mxu0 0
        %567 = vmatprep.subr.bf16.mxu0 0
        %568 = vmatpush1.bf16.msra.mxu0 0
        %569 = vmatprep.subr.bf16.mxu0 0
        %570 = vmatpush1.bf16.msra.mxu0 0
        %571 = vmatprep.subr.bf16.mxu0 0
        %572 = vmatpush1.bf16.msra.mxu0 0
        %573 = vmatprep.subr.bf16.mxu0 0
        %574 = vmatpush1.bf16.msra.mxu0 0
        %575 = vmatprep.mubr.bf16.mxu0 0
        %576 = vmatmul.mubr.bf16.gmra.mrb[0].mxu0 %v493
        %v577 = vpop.f32.mrb[0].mxu0
        %v578 = vadd.f32 %v487, %v577
        %v579 = vpop.f32.mrb[0].mxu0
        %v580 = vpop.f32.mrb[0].mxu0
        %v581 = vadd.f32 %v487, %v580
        %v582 = vpop.f32.mrb[0].mxu0
        %583 = vdwg.mxu0
        %v584 = vmul.f32 %v578, 0.5
        %v585 = vmul.f32 %v581, 0.5
        %v586 = vmul.f32 %v578, 0.044715
        %v587 = vmul.f32 %v581, 0.044715
        %v588 = vmul.f32 %v586, %v578
        %v589 = vmul.f32 %v587, %v581
        %v590 = vmul.f32 %v588, %v578
        %v591 = vmul.f32 %v589, %v581
        %v592 = vadd.f32 %v578, %v590
        %v593 = vadd.f32 %v581, %v591
        %v594 = vmul.f32 %v592, 0.7978846
        %v595 = vmul.f32 %v593, 0.7978846
        %v596 = vtanh.pop %v594
        %v597 = vtanh.pop %v595
        %v598 = vadd.f32 %v596, 1.0
        %v599 = vadd.f32 %v597, 1.0
        %v600 = vmul.f32 %v584, %v598
        %v601 = vmul.f32 %v585, %v599
        %v602 = vld [vmem:[%s379] sm:$0xf]
        %v603 = vld [vmem:[%s379 + $0x4] sm:$0xf]
        %v606 = vunpack.c.l.b16 %v602
        %v607 = vunpack.c.l.b16 %v603
        %v608 = vpack.c.b16 %v607, %v606
        %610 = vmatprep.subr.bf16.mxu0 0
        %611 = vmatpush1.bf16.msra.mxu0 %v527
        %612 = vmatprep.subr.bf16.mxu0 0
        %613 = vmatpush1.bf16.msra.mxu0 %v528
        %614 = vmatprep.subr.bf16.mxu0 0
        %615 = vmatpush1.bf16.msra.mxu0 %v529
        %616 = vmatprep.subr.bf16.mxu0 0
        %617 = vmatpush1.bf16.msra.mxu0 %v530
        %618 = vmatprep.subr.bf16.mxu0 0
        %619 = vmatpush1.bf16.msra.mxu0 %v531
        %620 = vmatprep.subr.bf16.mxu0 0
        %621 = vmatpush1.bf16.msra.mxu0 %v532
        %622 = vmatprep.subr.bf16.mxu0 0
        %623 = vmatpush1.bf16.msra.mxu0 %v533
        %624 = vmatprep.subr.bf16.mxu0 0
        %625 = vmatpush1.bf16.msra.mxu0 %v534
        %626 = vmatprep.subr.bf16.mxu0 0
        %627 = vmatpush1.bf16.msra.mxu0 0
        %628 = vmatprep.subr.bf16.mxu0 0
        %629 = vmatpush1.bf16.msra.mxu0 0
        %630 = vmatprep.subr.bf16.mxu0 0
        %631 = vmatpush1.bf16.msra.mxu0 0
        %632 = vmatprep.subr.bf16.mxu0 0
        %633 = vmatpush1.bf16.msra.mxu0 0
        %634 = vmatprep.subr.bf16.mxu0 0
        %635 = vmatpush1.bf16.msra.mxu0 0
        %636 = vmatprep.subr.bf16.mxu0 0
        %637 = vmatpush1.bf16.msra.mxu0 0
        %638 = vmatprep.subr.bf16.mxu0 0
        %639 = vmatpush1.bf16.msra.mxu0 0
        %640 = vmatprep.subr.bf16.mxu0 0
        %641 = vmatpush1.bf16.msra.mxu0 0
        %642 = vmatprep.mubr.bf16.mxu0 0
        %643 = vmatmul.mubr.bf16.gmra.mrb[0].mxu0 %v608
        %v644 = vpop.f32.mrb[0].mxu0
        %v645 = vadd.f32 %v487, %v644
        %v646 = vpop.f32.mrb[0].mxu0
        %v647 = vpop.f32.mrb[0].mxu0
        %v648 = vadd.f32 %v487, %v647
        %v649 = vpop.f32.mrb[0].mxu0
        %650 = vdwg.mxu0
        %v651 = vmul.f32 %v645, 0.5
        %v652 = vmul.f32 %v648, 0.5
        %v653 = vmul.f32 %v645, 0.044715
        %v654 = vmul.f32 %v648, 0.044715
        %v655 = vmul.f32 %v653, %v645
        %v656 = vmul.f32 %v654, %v648
        %v657 = vmul.f32 %v655, %v645
        %v658 = vmul.f32 %v656, %v648
        %v659 = vadd.f32 %v645, %v657
        %v660 = vadd.f32 %v648, %v658
        %v661 = vmul.f32 %v659, 0.7978846
        %v662 = vmul.f32 %v660, 0.7978846
        %v663 = vtanh.pop %v661
        %v664 = vtanh.pop %v662
        %v665 = vadd.f32 %v663, 1.0
        %v666 = vadd.f32 %v664, 1.0
        %v667 = vmul.f32 %v651, %v665
        %v668 = vmul.f32 %v652, %v666
        %v669 = vld [vmem:[%s388] sm:$0xf]
        %v670 = vld [vmem:[%s388 + $0x4] sm:$0xf]
        %v673 = vunpack.c.l.b16 %v669
        %v674 = vunpack.c.l.b16 %v670
        %v675 = vpack.c.b16 %v674, %v673
        %677 = vmatprep.subr.bf16.mxu0 0
        %678 = vmatpush1.bf16.msra.mxu0 %v527
        %679 = vmatprep.subr.bf16.mxu0 0
        %680 = vmatpush1.bf16.msra.mxu0 %v528
        %681 = vmatprep.subr.bf16.mxu0 0
        %682 = vmatpush1.bf16.msra.mxu0 %v529
        %683 = vmatprep.subr.bf16.mxu0 0
        %684 = vmatpush1.bf16.msra.mxu0 %v530
        %685 = vmatprep.subr.bf16.mxu0 0
        %686 = vmatpush1.bf16.msra.mxu0 %v531
        %687 = vmatprep.subr.bf16.mxu0 0
        %688 = vmatpush1.bf16.msra.mxu0 %v532
        %689 = vmatprep.subr.bf16.mxu0 0
        %690 = vmatpush1.bf16.msra.mxu0 %v533
        %691 = vmatprep.subr.bf16.mxu0 0
        %692 = vmatpush1.bf16.msra.mxu0 %v534
        %693 = vmatprep.subr.bf16.mxu0 0
        %694 = vmatpush1.bf16.msra.mxu0 0
        %695 = vmatprep.subr.bf16.mxu0 0
        %696 = vmatpush1.bf16.msra.mxu0 0
        %697 = vmatprep.subr.bf16.mxu0 0
        %698 = vmatpush1.bf16.msra.mxu0 0
        %699 = vmatprep.subr.bf16.mxu0 0
        %700 = vmatpush1.bf16.msra.mxu0 0
        %701 = vmatprep.subr.bf16.mxu0 0
        %702 = vmatpush1.bf16.msra.mxu0 0
        %703 = vmatprep.subr.bf16.mxu0 0
        %704 = vmatpush1.bf16.msra.mxu0 0
        %705 = vmatprep.subr.bf16.mxu0 0
        %706 = vmatpush1.bf16.msra.mxu0 0
        %707 = vmatprep.subr.bf16.mxu0 0
        %708 = vmatpush1.bf16.msra.mxu0 0
        %709 = vmatprep.mubr.bf16.mxu0 0
        %710 = vmatmul.mubr.bf16.gmra.mrb[0].mxu0 %v675
        %v711 = vpop.f32.mrb[0].mxu0
        %v712 = vadd.f32 %v487, %v711
        %v713 = vpop.f32.mrb[0].mxu0
        %v714 = vpop.f32.mrb[0].mxu0
        %v715 = vadd.f32 %v487, %v714
        %v716 = vpop.f32.mrb[0].mxu0
        %717 = vdwg.mxu0
        %v718 = vmul.f32 %v712, 0.5
        %v719 = vmul.f32 %v715, 0.5
        %v720 = vmul.f32 %v712, 0.044715
        %v721 = vmul.f32 %v715, 0.044715
        %v722 = vmul.f32 %v720, %v712
        %v723 = vmul.f32 %v721, %v715
        %v724 = vmul.f32 %v722, %v712
        %v725 = vmul.f32 %v723, %v715
        %v726 = vadd.f32 %v712, %v724
        %v727 = vadd.f32 %v715, %v725
        %v728 = vmul.f32 %v726, 0.7978846
        %v729 = vmul.f32 %v727, 0.7978846
        %v730 = vtanh.pop %v728
        %v731 = vtanh.pop %v729
        %v732 = vadd.f32 %v730, 1.0
        %v733 = vadd.f32 %v731, 1.0
        %v734 = vmul.f32 %v718, %v732
        %v735 = vmul.f32 %v719, %v733
        %v736 = vlaneseq
        %v737 = vshrl.u32 %v736, 7
        %v738 = vadd.s32 %v737, 8
        %s739 = smul.u32 %s33, 16
        %v740 = vstv %s739
        %v741 = vadd.s32 %v737, %v740
        %v742 = vadd.s32 %v738, %v740
        %v743 = vmul.u32 %v741, 2
        %v744 = vmul.u32 %v742, 2
        %v745 = vsub.s32 %v743, 1
        %v746 = vsub.s32 %v744, 1
        %vm747 = vcmp.ge.s32.totalorder %v745, 0
        %vm748 = vcmp.ge.s32.totalorder %v746, 0
        %v749 = vsel %vm747, 1, 0
        %v750 = vsel %vm748, 1, 0
        %vm751 = vcmp.eq.s32.totalorder %v749, 1
        %vm752 = vcmp.eq.s32.totalorder %v750, 1
        %v753 = vsel %vm751, %v600, 0.0
        %v754 = vsel %vm752, %v601, 0.0
        %v755 = vadd.s32 %v743, 1
        %v756 = vadd.s32 %v744, 1
        %vm757 = vcmp.lt.s32.totalorder %v755, 64
        %vm758 = vcmp.lt.s32.totalorder %v756, 64
        %v759 = vsel %vm757, 1, 0
        %v760 = vsel %vm758, 1, 0
        %vm761 = vcmp.eq.s32.totalorder %v759, 1
        %vm762 = vcmp.eq.s32.totalorder %v760, 1
        %v763 = vsel %vm761, %v734, 0.0
        %v764 = vsel %vm762, %v735, 0.0
        %v765 = vpack.c.bf16 %v754, %v753
        %v766 = vld [vmem:[%s5] sm:$0xf]
        %v767 = vld [vmem:[%s5 + $0x4] sm:$0xf]
        %v768 = vld [vmem:[%s5 + $0x8] sm:$0xf]
        %v769 = vld [vmem:[%s5 + $0xc] sm:$0xf]
        %v770 = vpack.c.bf16 %v668, %v667
        %s771 = scalar_lea.vmem %s5, 16
        %v772 = vld [vmem:[%s771] sm:$0xf]
        %v773 = vld [vmem:[%s771 + $0x4] sm:$0xf]
        %v774 = vld [vmem:[%s771 + $0x8] sm:$0xf]
        %v775 = vld [vmem:[%s771 + $0xc] sm:$0xf]
        %v780 = vunpack.c.l.b16 %v772
        %v781 = vunpack.c.l.b16 %v773
        %v782 = vunpack.c.l.b16 %v774
        %v783 = vunpack.c.l.b16 %v775
        %v784 = vpack.c.b16 %v781, %v780
        %v785 = vpack.c.b16 %v783, %v782
        %vm788 = vcmask 261120
        %v790 = vsel %vm788, %v770, 0
        %792 = vmatprep.subr.bf16.mxu0 0
        %793 = vmatpush1.bf16.msra.mxu0 %v784
        %794 = vmatprep.subr.bf16.mxu0 0
        %795 = vmatpush1.bf16.msra.mxu0 %v785
        %796 = vmatprep.subr.bf16.mxu0 0
        %797 = vmatpush1.bf16.msra.mxu0 0
        %798 = vmatprep.subr.bf16.mxu0 0
        %799 = vmatpush1.bf16.msra.mxu0 0
        %800 = vmatprep.subr.bf16.mxu0 0
        %801 = vmatpush1.bf16.msra.mxu0 0
        %802 = vmatprep.subr.bf16.mxu0 0
        %803 = vmatpush1.bf16.msra.mxu0 0
        %804 = vmatprep.subr.bf16.mxu0 0
        %805 = vmatpush1.bf16.msra.mxu0 0
        %806 = vmatprep.subr.bf16.mxu0 0
        %807 = vmatpush1.bf16.msra.mxu0 0
        %808 = vmatprep.subr.bf16.mxu0 0
        %809 = vmatpush1.bf16.msra.mxu0 0
        %810 = vmatprep.subr.bf16.mxu0 0
        %811 = vmatpush1.bf16.msra.mxu0 0
        %812 = vmatprep.subr.bf16.mxu0 0
        %813 = vmatpush1.bf16.msra.mxu0 0
        %814 = vmatprep.subr.bf16.mxu0 0
        %815 = vmatpush1.bf16.msra.mxu0 0
        %816 = vmatprep.subr.bf16.mxu0 0
        %817 = vmatpush1.bf16.msra.mxu0 0
        %818 = vmatprep.subr.bf16.mxu0 0
        %819 = vmatpush1.bf16.msra.mxu0 0
        %820 = vmatprep.subr.bf16.mxu0 0
        %821 = vmatpush1.bf16.msra.mxu0 0
        %822 = vmatprep.subr.bf16.mxu0 0
        %823 = vmatpush1.bf16.msra.mxu0 0
        %824 = vmatprep.mubr.bf16.mxu0 0
        %825 = vmatmul.mubr.bf16.gmra.mrb[0].mxu0 %v790
        %v826 = vpop.f32.mrb[0].mxu0
        %v827 = vadd.f32 0.0, %v826
        %v828 = vpop.f32.mrb[0].mxu0
        %v829 = vpop.f32.mrb[0].mxu0
        %v830 = vadd.f32 0.0, %v829
        %v831 = vpop.f32.mrb[0].mxu0
        %832 = vdwg.mxu0
        %v837 = vunpack.c.l.b16 %v766
        %v838 = vunpack.c.l.b16 %v767
        %v839 = vunpack.c.l.b16 %v768
        %v840 = vunpack.c.l.b16 %v769
        %v841 = vpack.c.b16 %v838, %v837
        %v842 = vpack.c.b16 %v840, %v839
        %v846 = vsel %vm788, %v765, 0
        %848 = vmatprep.subr.bf16.mxu0 0
        %849 = vmatpush1.bf16.msra.mxu0 %v841
        %850 = vmatprep.subr.bf16.mxu0 0
        %851 = vmatpush1.bf16.msra.mxu0 %v842
        %852 = vmatprep.subr.bf16.mxu0 0
        %853 = vmatpush1.bf16.msra.mxu0 0
        %854 = vmatprep.subr.bf16.mxu0 0
        %855 = vmatpush1.bf16.msra.mxu0 0
        %856 = vmatprep.subr.bf16.mxu0 0
        %857 = vmatpush1.bf16.msra.mxu0 0
        %858 = vmatprep.subr.bf16.mxu0 0
        %859 = vmatpush1.bf16.msra.mxu0 0
        %860 = vmatprep.subr.bf16.mxu0 0
        %861 = vmatpush1.bf16.msra.mxu0 0
        %862 = vmatprep.subr.bf16.mxu0 0
        %863 = vmatpush1.bf16.msra.mxu0 0
        %864 = vmatprep.subr.bf16.mxu0 0
        %865 = vmatpush1.bf16.msra.mxu0 0
        %866 = vmatprep.subr.bf16.mxu0 0
        %867 = vmatpush1.bf16.msra.mxu0 0
        %868 = vmatprep.subr.bf16.mxu0 0
        %869 = vmatpush1.bf16.msra.mxu0 0
        %870 = vmatprep.subr.bf16.mxu0 0
        %871 = vmatpush1.bf16.msra.mxu0 0
        %872 = vmatprep.subr.bf16.mxu0 0
        %873 = vmatpush1.bf16.msra.mxu0 0
        %874 = vmatprep.subr.bf16.mxu0 0
        %875 = vmatpush1.bf16.msra.mxu0 0
        %876 = vmatprep.subr.bf16.mxu0 0
        %877 = vmatpush1.bf16.msra.mxu0 0
        %878 = vmatprep.subr.bf16.mxu0 0
        %879 = vmatpush1.bf16.msra.mxu0 0
        %880 = vmatprep.mubr.bf16.mxu0 0
        %881 = vmatmul.mubr.bf16.gmra.mrb[0].mxu0 %v846
        %v882 = vpop.f32.mrb[0].mxu0
        %v883 = vadd.f32 %v827, %v882
        %v884 = vpop.f32.mrb[0].mxu0
        %v885 = vpop.f32.mrb[0].mxu0
        %v886 = vadd.f32 %v830, %v885
        %v887 = vpop.f32.mrb[0].mxu0
        %888 = vdwg.mxu0
        %v889 = vpack.c.bf16 %v764, %v763
        %s890 = scalar_lea.vmem %s5, 32
        %v891 = vld [vmem:[%s890] sm:$0xf]
        %v892 = vld [vmem:[%s890 + $0x4] sm:$0xf]
        %v893 = vld [vmem:[%s890 + $0x8] sm:$0xf]
        %v894 = vld [vmem:[%s890 + $0xc] sm:$0xf]
        %v899 = vunpack.c.l.b16 %v891
        %v900 = vunpack.c.l.b16 %v892
        %v901 = vunpack.c.l.b16 %v893
        %v902 = vunpack.c.l.b16 %v894
        %v903 = vpack.c.b16 %v900, %v899
        %v904 = vpack.c.b16 %v902, %v901
        %v908 = vsel %vm788, %v889, 0
        %910 = vmatprep.subr.bf16.mxu0 0
        %911 = vmatpush1.bf16.msra.mxu0 %v903
        %912 = vmatprep.subr.bf16.mxu0 0
        %913 = vmatpush1.bf16.msra.mxu0 %v904
        %914 = vmatprep.subr.bf16.mxu0 0
        %915 = vmatpush1.bf16.msra.mxu0 0
        %916 = vmatprep.subr.bf16.mxu0 0
        %917 = vmatpush1.bf16.msra.mxu0 0
        %918 = vmatprep.subr.bf16.mxu0 0
        %919 = vmatpush1.bf16.msra.mxu0 0
        %920 = vmatprep.subr.bf16.mxu0 0
        %921 = vmatpush1.bf16.msra.mxu0 0
        %922 = vmatprep.subr.bf16.mxu0 0
        %923 = vmatpush1.bf16.msra.mxu0 0
        %924 = vmatprep.subr.bf16.mxu0 0
        %925 = vmatpush1.bf16.msra.mxu0 0
        %926 = vmatprep.subr.bf16.mxu0 0
        %927 = vmatpush1.bf16.msra.mxu0 0
        %928 = vmatprep.subr.bf16.mxu0 0
        %929 = vmatpush1.bf16.msra.mxu0 0
        %930 = vmatprep.subr.bf16.mxu0 0
        %931 = vmatpush1.bf16.msra.mxu0 0
        %932 = vmatprep.subr.bf16.mxu0 0
        %933 = vmatpush1.bf16.msra.mxu0 0
        %934 = vmatprep.subr.bf16.mxu0 0
        %935 = vmatpush1.bf16.msra.mxu0 0
        %936 = vmatprep.subr.bf16.mxu0 0
        %937 = vmatpush1.bf16.msra.mxu0 0
        %938 = vmatprep.subr.bf16.mxu0 0
        %939 = vmatpush1.bf16.msra.mxu0 0
        %940 = vmatprep.subr.bf16.mxu0 0
        %941 = vmatpush1.bf16.msra.mxu0 0
        %942 = vmatprep.mubr.bf16.mxu0 0
        %943 = vmatmul.mubr.bf16.gmra.mrb[0].mxu0 %v908
        %v944 = vpop.f32.mrb[0].mxu0
        %v945 = vadd.f32 0.0, %v944
        %v946 = vpop.f32.mrb[0].mxu0
        %v947 = vpop.f32.mrb[0].mxu0
        %v948 = vadd.f32 0.0, %v947
        %v949 = vpop.f32.mrb[0].mxu0
        %950 = vdwg.mxu0
        %v951 = vadd.f32 %v883, %v945
        %v952 = vadd.f32 %v886, %v948
        %v953 = vld [vmem:[%s6] sm:$0x1]
        %v955 = vlaneseq
        %v956 = vshrl.u32 %v955, 7
        %v957 = vsub.s32 0, %v956
        %v958 = vrot.slane %v953, %v957
        %v960 = vadd.f32 %v951, %v958
        %v961 = vadd.f32 %v952, %v958
        %v962 = vmul.f32 %v960, 0.5
        %v963 = vmul.f32 %v961, 0.5
        %v964 = vmul.f32 %v960, 0.044715
        %v965 = vmul.f32 %v961, 0.044715
        %v966 = vmul.f32 %v964, %v960
        %v967 = vmul.f32 %v965, %v961
        %v968 = vmul.f32 %v966, %v960
        %v969 = vmul.f32 %v967, %v961
        %v970 = vadd.f32 %v960, %v968
        %v971 = vadd.f32 %v961, %v969
        %v972 = vmul.f32 %v970, 0.7978846
        %v973 = vmul.f32 %v971, 0.7978846
        %v974 = vtanh.pop %v972
        %v975 = vtanh.pop %v973
        %v976 = vadd.f32 %v974, 1.0
        %v977 = vadd.f32 %v975, 1.0
        %v978 = vmul.f32 %v962, %v976
        %v979 = vmul.f32 %v963, %v977
        %v980 = vld [vmem:[%s397] sm:$0xff]
        %v981 = vld [vmem:[%s397 + $0x8] sm:$0xff]
        %v982 = vadd.f32 %v978, %v980
        %v983 = vadd.f32 %v979, %v981
        %984 = vst.msk [vmem:[%s448] sm:$0xff] %vm788, %v982
        %985 = vst.msk [vmem:[%s448 + $0x8] sm:$0xff] %vm788, %v983
        %s986 = sand.u32 %s244, 1
        %s987 = scalar_lea.sflag [#allocation4], %s986
        %s988 = sand.u32 %s244, 1
        %s989 = smul.addr %s988, 16
        %s990 = scalar_lea.vmem [#allocation8], %s989
        // Predicated region
        $region65: #{tpu_custom_call.1} parent=51 // pred_check
          %p991 = pneg %p254
        $region66: #{tpu_custom_call.1} parent=51 // pred_check_branch
          %993 = sbr.rel (%p991) target = $region68
        $region67: #{tpu_custom_call.1} parent=51 // pred_region
          %s994 = smul.u32 2, %s33
          %s996 = ssub.s32 256, 256
          %997 = vsyncadd %s987, %s996
          %s998 = smul.addr %s32, 4
          %s999 = sadd.s32 %s994, %s998
          %s1000 = smul.addr %s999, 128
          %s1001 = scalar_lea.hbm %s8, %s1000
          %s1002 = sshll.u32 %s990, 4
          %s1003 = int_to_ptr.vmem [resolvable:$true] %s1002
          %1008 = dma.vmem_to_hbm [thread:$0]  %s1003, 256, %s1001, %s987, 128, 128, 8
        $region68: #{tpu_custom_call.1} parent=51 // pred_fallthru
          _
      $region52: #{tpu_custom_call.1} parent=5 // pred_fallthru
        _
      %p1009 = scmp.le.s32.totalorder 2, %s23
      // Predicated region
      $region69: #{tpu_custom_call.1} parent=5 // pred_check
        %p1010 = pneg %p1009
      $region70: #{tpu_custom_call.1} parent=5 // pred_check_branch
        %1012 = sbr.rel (%p1010) target = $region72
      $region71: #{tpu_custom_call.1} parent=5 // pred_region
        %s1013 = ssub.s32 %s23, 2
        // Predicated region
        $region73: #{tpu_custom_call.1} parent=71 // pred_check
          %p1014 = pneg %p260
        $region74: #{tpu_custom_call.1} parent=71 // pred_check_branch
          %1016 = sbr.rel (%p1014) target = $region76
        $region75: #{tpu_custom_call.1} parent=71 // pred_region
          %s1017 = sand.u32 %s245, 1
          %s1018 = scalar_lea.sflag [#allocation4], %s1017
          %s1019 = sand.u32 %s245, 1
          %s1020 = smul.addr %s1019, 16
          %s1021 = scalar_lea.vmem [#allocation8], %s1020
          %1022 = dma.done %s1018, 256
        $region76: #{tpu_custom_call.1} parent=71 // pred_fallthru
          _
      $region72: #{tpu_custom_call.1} parent=5 // pred_fallthru
        _
    $region6: #{tpu_custom_call.1} parent=1 // loop_footer
      %s27 = sadd.s32 1, %s23
    $region7: #{tpu_custom_call.1} parent=1 // loop_footer_branch
      %22 = sbr.rel target = $region3
    $region8: #{tpu_custom_call.1} parent=1 // loop_exit
      _
    %1023 = vsyncpa [#allocation3], 1
    %s1024 = scalar_lea.sflag [#allocation3], 1
    %1025 = vsyncpa %s1024, 1
    %1026 = vsyncpa [#allocation6], 1
    %s1027 = scalar_lea.sflag [#allocation6], 1
    %1028 = vsyncpa %s1027, 1
    %1029 = vsyncpa [#allocation4], 1
    %s1030 = scalar_lea.sflag [#allocation4], 1
    %1031 = vsyncpa %s1030, 1

</llo_original>
